<compile_context>
chip_gen: v6e
topology: v6e:2x2x1
jax: 0.10.0
libtpu: 0.0.40
codegen_flags: <defaults>
</compile_context>

<pallas_src>
import functools
from math import sqrt

import jax
import jax.numpy as jnp
from jax.experimental import pallas as pl
from jax.experimental.pallas import tpu as pltpu


def _chip_info():
    """Best-effort TPU generation detection.

    Returns (physical_vmem_bytes_per_core, num_tensorcores, has_bf16_eup).
    Only used for performance heuristics; correctness never depends on it.
    """
    kind = ""
    try:
        kind = jax.devices()[0].device_kind.lower()
    except Exception:
        pass
    if "v7" in kind or "7x" in kind:
        return 64 << 20, 2, True           # v7x: 64 MiB VMEM/TC, 2 TCs, bf16 EUP
    if "v6" in kind:
        return 128 << 20, 1, True          # v6e: 128 MiB, 1 TC, bf16 EUP
    if "v5" in kind or "v4" in kind:
        n_tc = 2 if ("v4" in kind or "v5p" in kind) else 1
        return 128 << 20, n_tc, False      # v5e/v5p/v4: no bf16 EUP
    return 64 << 20, 1, False              # unknown: conservative VMEM


def _self_attn_kernel(x_ref, w_ref, b_ref, o_ref, *,
                      dk_pad, dv, norm_fact, mxu_dtype, exp_dtype,
                      q_chunk, approx_recip):
    # x_ref: (bt, S, D); w_ref: (D, 2*dk_pad+dv+1); b_ref: (1, 2*dk_pad+dv+1)
    # o_ref: (bt, S, dv)
    bt, s, d = x_ref.shape
    n_qkv = w_ref.shape[1]                              # 2*dk_pad + dv + 1

    # --- fused QKV(+ones) projection: one MXU pass with M = bt*S rows.
    x2 = x_ref[...].reshape(bt * s, d).astype(mxu_dtype)
    qkv = jnp.dot(x2, w_ref[...], preferred_element_type=jnp.float32)
    qkv = (qkv + b_ref[...]).astype(mxu_dtype)          # single cast post-bias
    qkv = qkv.reshape(bt, s, n_qkv)

    # Lane-aligned slices (q/k start at multiples of 128; padded cols are 0).
    q = qkv[:, :, :dk_pad]
    k = qkv[:, :, dk_pad:2 * dk_pad]
    v = qkv[:, :, 2 * dk_pad:]                          # (bt, s, dv+1); last col == 1

    # --- query-chunked scores/softmax/PV: only a (bt, tq, s) tile is live.
    for q0 in range(0, s, q_chunk):
        q1 = min(s, q0 + q_chunk)
        qc = q[:, q0:q1, :]
        # scores = Qc @ K^T per batch — NT contraction, no explicit transpose.
        sc = jnp.einsum('bqd,bkd->bqk', qc, k,
                        preferred_element_type=jnp.float32)
        sc = sc - jnp.max(sc, axis=-1, keepdims=True)
        e = jnp.exp(sc.astype(exp_dtype))               # bf16 on v6e/v7x fast path
        # e @ [V | 1]: output AND the softmax row-sum in one f32-accum matmul.
        ov = jnp.einsum('bqk,bkv->bqv', e.astype(mxu_dtype), v,
                        preferred_element_type=jnp.float32)   # (bt, tq, dv+1)
        rowsum = ov[:, :, dv:dv + 1]
        scale = pl.reciprocal(rowsum, approx=approx_recip) * norm_fact
        o_ref[:, q0:q1, :] = (ov[:, :, :dv] * scale).astype(o_ref.dtype)


def self_attention_pallas(x, wq, bq, wk, bk, wv, bv, dim_k, *,
                          precise=False, batch_block=None, q_chunk=None):
    """x: (B, S, D); w*: (D, out) pre-transposed; b*: (out,).

    Returns (B, S, dim_v) float32. `precise=True`: f32 MXU operands, f32 exp,
    exact reciprocal. `precise=False`: bf16 MXU operands (f32 accumulation),
    approx EUP reciprocal, bf16 exp on chips with a bf16 EUP.
    """
    B, S, D = x.shape
    dk = wq.shape[1]
    dv = wv.shape[1]
    dk_pad = 128 * pl.cdiv(dk, 128)    # lane-align Q/K slices inside the kernel
    n_qkv = 2 * dk_pad + dv + 1        # +1: constant-ones column -> row sums
    norm_fact = 1.0 / sqrt(dim_k)

    vmem_phys, num_tc, bf16_eup = _chip_info()
    mxu_dtype = jnp.float32 if precise else jnp.bfloat16
    exp_dtype = jnp.bfloat16 if (bf16_eup and not precise) else jnp.float32
    w_itemsize = 4 if precise else 2
    e_itemsize = 2 if exp_dtype == jnp.bfloat16 else 4

    # --- fused, lane-padded QKV weight (MXU dtype) + f32 bias (+ones column).
    w_qkv = jnp.zeros((D, n_qkv), dtype=mxu_dtype)
    w_qkv = w_qkv.at[:, :dk].set(wq.astype(mxu_dtype))
    w_qkv = w_qkv.at[:, dk_pad:dk_pad + dk].set(wk.astype(mxu_dtype))
    w_qkv = w_qkv.at[:, 2 * dk_pad:2 * dk_pad + dv].set(wv.astype(mxu_dtype))
    b_qkv = jnp.zeros((1, n_qkv), dtype=jnp.float32)
    b_qkv = b_qkv.at[:, :dk].set(bq.astype(jnp.float32))
    b_qkv = b_qkv.at[:, dk_pad:dk_pad + dk].set(bk.astype(jnp.float32))
    b_qkv = b_qkv.at[:, 2 * dk_pad:2 * dk_pad + dv].set(bv.astype(jnp.float32))
    b_qkv = b_qkv.at[:, 2 * dk_pad + dv].set(1.0)       # rowsum ones column

    # --- VMEM-budgeted tile selection -----------------------------------
    def workspace_bytes(bt, tq):
        # double-buffered pipeline blocks + resident weight/bias (counted 2x)
        io = 2 * bt * S * D * x.dtype.itemsize + 2 * bt * S * dv * 4
        w = 2 * D * n_qkv * w_itemsize + 2 * 8 * n_qkv * 4
        # in-kernel temporaries: qkv (f32 accum + mxu-dtype copy),
        # per-chunk scores (f32) + e + output (f32)
        tmp = bt * S * n_qkv * (4 + (2 if mxu_dtype == jnp.bfloat16 else 0))
        tmp += bt * tq * S * (4 + e_itemsize) + bt * tq * (dv + 1) * 4
        return io + w + tmp

    vmem_budget = int(vmem_phys * 0.6)

    # Batch block: biggest bt within budget, targeting ~1024 projection rows,
    # but leaving at least num_tc grid steps so megacore chips use both TCs.
    bt_cap = batch_block if batch_block is not None else max(1, pl.cdiv(1024, S))
    bt_cap = max(1, min(bt_cap, max(1, B // num_tc)))
    bt = bt_cap
    while bt > 1 and workspace_bytes(bt, min(S, 512)) > vmem_budget:
        bt -= 1

    # Query chunk: bound the live (bt, tq, S) score tile for large S.
    if q_chunk is None:
        q_chunk = S
        while q_chunk > 8 and workspace_bytes(bt, q_chunk) > vmem_budget:
            q_chunk = max(8, ((q_chunk + 1) // 2 + 7) // 8 * 8)
    q_chunk = max(1, min(q_chunk, S))

    vmem_limit = int(min(vmem_phys - (4 << 20),
                         max(workspace_bytes(bt, q_chunk) * 1.4, 32 << 20)))

    kernel = functools.partial(
        _self_attn_kernel, dk_pad=dk_pad, dv=dv, norm_fact=norm_fact,
        mxu_dtype=mxu_dtype, exp_dtype=exp_dtype, q_chunk=q_chunk,
        approx_recip=not precise)

    # Masked partial last block instead of a divisor search over B.
    grid = (pl.cdiv(B, bt),)

    return pl.pallas_call(
        kernel,
        out_shape=jax.ShapeDtypeStruct((B, S, dv), jnp.float32),
        grid_spec=pltpu.PrefetchScalarGridSpec(
            num_scalar_prefetch=0,
            grid=grid,
            in_specs=[
                pl.BlockSpec((bt, S, D), lambda b: (b, 0, 0)),   # x block
                pl.BlockSpec((D, n_qkv), lambda b: (0, 0)),      # fused W_qkv
                pl.BlockSpec((1, n_qkv), lambda b: (0, 0)),      # fused b_qkv
            ],
            out_specs=pl.BlockSpec((bt, S, dv), lambda b: (b, 0, 0)),
        ),
        compiler_params=pltpu.CompilerParams(
            dimension_semantics=("parallel",),
            vmem_limit_bytes=vmem_limit),
    )(x, w_qkv, b_qkv)


def self_attention_ref(x, wq, bq, wk, bk, wv, bv, dim_k):
    """Plain-JAX reference mirroring the PyTorch forward exactly (mask=None)."""
    norm_fact = 1.0 / sqrt(dim_k)
    Q = x @ wq + bq
    K = x @ wk + bk
    V = x @ wv + bv
    res = jnp.einsum('bsd,btd->bst', Q, K)
    attn = jax.nn.softmax(res, axis=-1) * norm_fact   # softmax FIRST, then scale
    return jnp.einsum('bst,btv->bsv', attn, V)


if __name__ == "__main__":
    def make_inputs(key, B, S, D, dim_k, dim_v):
        kx, kq, kbq, kk, kbk, kv, kbv = jax.random.split(key, 7)
        x = jax.random.normal(kx, (B, S, D), dtype=jnp.float32)
        # nn.Linear(input_dim, out): weight (out, in), bias (out,). Stored as
        # (in, out) so the kernel computes x @ W + b directly.
        s = 1.0 / sqrt(D)
        wq = jax.random.uniform(kq, (D, dim_k), jnp.float32, -s, s)
        bq = jax.random.uniform(kbq, (dim_k,), jnp.float32, -s, s)
        wk = jax.random.uniform(kk, (D, dim_k), jnp.float32, -s, s)
        bk = jax.random.uniform(kbk, (dim_k,), jnp.float32, -s, s)
        wv = jax.random.uniform(kv, (D, dim_v), jnp.float32, -s, s)
        bv = jax.random.uniform(kbv, (dim_v,), jnp.float32, -s, s)
        return x, wq, bq, wk, bk, wv, bv

    key = jax.random.PRNGKey(0)

    # 1) module-consistent small shapes, precise path (f32 MXU, exact recip).
    B, S, D, dim_k, dim_v = 2, 8, 32, 16, 32
    args = make_inputs(key, B, S, D, dim_k, dim_v)
    ref = self_attention_ref(*args, dim_k)
    out = jax.block_until_ready(
        self_attention_pallas(*args, dim_k, precise=True))
    assert out.shape == (B, S, dim_v)
    assert jnp.allclose(out, ref, atol=1e-5, rtol=1e-5), \
        "precise kernel mismatch vs reference"

    # 2) fast path (bf16 MXU operands, f32 accumulation, approx reciprocal,
    #    bf16 exp only on chips with a bf16 EUP).
    out_fast = jax.block_until_ready(
        self_attention_pallas(*args, dim_k, precise=False))
    assert out_fast.shape == (B, S, dim_v)
    assert jnp.allclose(out_fast, ref, atol=2e-2, rtol=2e-2), \
        "bf16 kernel mismatch vs reference"

    # 3) awkward batch (partial last grid block) + explicit query chunking.
    B2, S2 = 5, 16
    args2 = make_inputs(jax.random.PRNGKey(0), B2, S2, D, dim_k, dim_v)
    ref2 = self_attention_ref(*args2, dim_k)
    out2 = jax.block_until_ready(
        self_attention_pallas(*args2, dim_k, precise=True,
                              batch_block=2, q_chunk=8))
    assert out2.shape == (B2, S2, dim_v)
    assert jnp.allclose(out2, ref2, atol=1e-4, rtol=1e-4), \
        "partial-block / q-chunked kernel mismatch vs reference"

    print("KERNEL_OK")
</pallas_src>

<mosaic_0001>
module attributes {stable_mosaic.version = 11 : i64} {
  func.func @_self_attn_kernel(%arg0: i32, %arg1: memref<2x8x32xf32, #tpu.memory_space<vmem>>, %arg2: memref<32x289xf32, #tpu.memory_space<vmem>>, %arg3: memref<1x289xf32, #tpu.memory_space<vmem>>, %arg4: memref<2x8x32xf32, #tpu.memory_space<vmem>>) attributes {dimension_semantics = [#tpu.dimension_semantics<parallel>], iteration_bounds = array<i64: 1>, scalar_prefetch = 0 : i64, scratch_operands = 0 : i64, tpu.core_type = #tpu.core_type<tc>, window_params = [{transform_indices = @transform_0, window_bounds = array<i64: 2, 8, 32>}, {pipeline_mode = #tpu.pipeline_mode<synchronous>, transform_indices = @transform_1, window_bounds = array<i64: 32, 289>}, {pipeline_mode = #tpu.pipeline_mode<synchronous>, transform_indices = @transform_2, window_bounds = array<i64: 1, 289>}, {transform_indices = @transform_3, window_bounds = array<i64: 2, 8, 32>}]} {
    %c0 = arith.constant 0 : index
    %c0_0 = arith.constant 0 : index
    %c0_1 = arith.constant 0 : index
    %0 = vector.load %arg1[%c0, %c0_0, %c0_1] : memref<2x8x32xf32, #tpu.memory_space<vmem>>, vector<2x8x32xf32>
    %1 = vector.shape_cast %0 : vector<2x8x32xf32> to vector<16x32xf32>
    %c0_2 = arith.constant 0 : index
    %c0_3 = arith.constant 0 : index
    %2 = vector.load %arg2[%c0_2, %c0_3] : memref<32x289xf32, #tpu.memory_space<vmem>>, vector<32x289xf32>
    %cst = arith.constant dense<0.000000e+00> : vector<16x289xf32>
    %3 = tpu.matmul %1, %2, %cst {dimension_numbers = #tpu.dot_dimension_numbers<[1], [0], [0], [1], [0, 0, 1, 1], [], []>} : vector<16x32xf32>, vector<32x289xf32>, vector<16x289xf32> -> vector<16x289xf32>
    %c0_4 = arith.constant 0 : index
    %c0_5 = arith.constant 0 : index
    %4 = vector.load %arg3[%c0_4, %c0_5] : memref<1x289xf32, #tpu.memory_space<vmem>>, vector<1x289xf32>
    %5 = vector.broadcast %4 : vector<1x289xf32> to vector<16x289xf32>
    %6 = arith.addf %3, %5 : vector<16x289xf32>
    %7 = vector.shape_cast %6 : vector<16x289xf32> to vector<2x8x289xf32>
    %8 = vector.extract_strided_slice %7 {offsets = [0, 0, 0], sizes = [2, 8, 128], strides = [1, 1, 1]} : vector<2x8x289xf32> to vector<2x8x128xf32>
    %9 = vector.extract_strided_slice %7 {offsets = [0, 0, 128], sizes = [2, 8, 128], strides = [1, 1, 1]} : vector<2x8x289xf32> to vector<2x8x128xf32>
    %10 = vector.extract_strided_slice %7 {offsets = [0, 0, 256], sizes = [2, 8, 33], strides = [1, 1, 1]} : vector<2x8x289xf32> to vector<2x8x33xf32>
    "tpu.trace_start"() <{level = 10 : i32, message = "bqd,bkd->bqk"}> : () -> ()
    %cst_6 = arith.constant dense<0.000000e+00> : vector<2x8x8xf32>
    %11 = tpu.matmul %8, %9, %cst_6 {dimension_numbers = #tpu.dot_dimension_numbers<[2], [2], [1], [1], [0, 0, 0, 1, 1, 1], [0], [0]>} : vector<2x8x128xf32>, vector<2x8x128xf32>, vector<2x8x8xf32> -> vector<2x8x8xf32>
    "tpu.trace_stop"() : () -> ()
    %cst_7 = arith.constant dense<0xFF800000> : vector<2x8xf32>
    %12 = vector.multi_reduction <maximumf>, %11, %cst_7 [2] : vector<2x8x8xf32> to vector<2x8xf32>
    %13 = vector.shape_cast %12 : vector<2x8xf32> to vector<2x8x1xf32>
    %14 = vector.broadcast %13 : vector<2x8x1xf32> to vector<2x8x8xf32>
    %15 = arith.subf %11, %14 : vector<2x8x8xf32>
    %16 = math.exp %15 : vector<2x8x8xf32>
    "tpu.trace_start"() <{level = 10 : i32, message = "bqk,bkv->bqv"}> : () -> ()
    %cst_8 = arith.constant dense<0.000000e+00> : vector<2x8x33xf32>
    %17 = tpu.matmul %16, %10, %cst_8 {dimension_numbers = #tpu.dot_dimension_numbers<[2], [1], [1], [2], [0, 0, 0, 1, 1, 2], [0], [0]>} : vector<2x8x8xf32>, vector<2x8x33xf32>, vector<2x8x33xf32> -> vector<2x8x33xf32>
    "tpu.trace_stop"() : () -> ()
    %18 = vector.extract_strided_slice %17 {offsets = [0, 0, 32], sizes = [2, 8, 1], strides = [1, 1, 1]} : vector<2x8x33xf32> to vector<2x8x1xf32>
    %19 = tpu.reciprocal %18 : vector<2x8x1xf32> -> vector<2x8x1xf32>
    %cst_9 = arith.constant 2.500000e-01 : f32
    %20 = vector.broadcast %cst_9 : f32 to vector<2x8x1xf32>
    %21 = arith.mulf %19, %20 : vector<2x8x1xf32>
    %22 = vector.extract_strided_slice %17 {offsets = [0, 0, 0], sizes = [2, 8, 32], strides = [1, 1, 1]} : vector<2x8x33xf32> to vector<2x8x32xf32>
    %23 = vector.broadcast %21 : vector<2x8x1xf32> to vector<2x8x32xf32>
    %24 = arith.mulf %22, %23 : vector<2x8x32xf32>
    %c0_10 = arith.constant 0 : index
    %c0_11 = arith.constant 0 : index
    %c0_12 = arith.constant 0 : index
    %25 = vector.load %arg4[%c0_10, %c0_11, %c0_12] : memref<2x8x32xf32, #tpu.memory_space<vmem>>, vector<2x8x32xf32>
    tpu.vector_store %arg4[%c0_10, %c0_11, %c0_12], %24 {strides = array<i32>} : memref<2x8x32xf32, #tpu.memory_space<vmem>>, vector<2x8x32xf32>,
    return
  }
  func.func @transform_0(%arg0: i32) -> (i32, i32, i32) {
    %c0_i32 = arith.constant 0 : i32
    %c0_i32_0 = arith.constant 0 : i32
    %c0_i32_1 = arith.constant 0 : i32
    return %arg0, %c0_i32, %c0_i32_0 : i32, i32, i32
  }
  func.func @transform_1(%arg0: i32) -> (i32, i32) {
    %c0_i32 = arith.constant 0 : i32
    %c0_i32_0 = arith.constant 0 : i32
    %c0_i32_1 = arith.constant 0 : i32
    return %c0_i32, %c0_i32_0 : i32, i32
  }
  func.func @transform_2(%arg0: i32) -> (i32, i32) {
    %c0_i32 = arith.constant 0 : i32
    %c0_i32_0 = arith.constant 0 : i32
    %c0_i32_1 = arith.constant 0 : i32
    return %c0_i32, %c0_i32_0 : i32, i32
  }
  func.func @transform_3(%arg0: i32) -> (i32, i32, i32) {
    %c0_i32 = arith.constant 0 : i32
    %c0_i32_0 = arith.constant 0 : i32
    %c0_i32_1 = arith.constant 0 : i32
    return %arg0, %c0_i32, %c0_i32_0 : i32, i32, i32
  }
}

</mosaic_0001>

<llo_original>
// kernel: tpu_custom_call.1
$region0: #{tpu_custom_call.1}
  #allocation0 [shape = 'u32[]', space=smem, size = 0x4, offset = 0x4, fixed_abs, tag = 'smem constant byte address 0x4 - core index']
  #allocation1 [shape = 'u32[144,128]{1,0:T(1,128)}', space=vmem, size = 0x12000, scoped, tag = 'internal scratch']
  %s0 = inlined_call_operand.hbm [shape: f32[2,8,32], index: 0, kind: input, shape index: {}]
  %s1 = inlined_call_operand.hbm [shape: f32[32,289], index: 1, kind: input, shape index: {}]
  %s2 = inlined_call_operand.vmem [shape: f32[1,289], index: 2, kind: input, shape index: {}]
  %s3 = inlined_call_operand.hbm [shape: f32[2,8,32], index: 3, kind: output, shape index: {}]
  %s4 = sld [smem:[#allocation0]]
  $region30: #{tpu_custom_call.1} parent=0
    _
  %s6 = ssub.s32 1, %s4
  %s7 = scalar_select 0, %s6, %s4
  $region1: #{tpu_custom_call.1} parent=0
    #allocation2 [shape = 'u8[8192]{0}', space=vmem, size = 0x2000, scoped, tag = 'input window, operand 0, single buffered']
    #allocation3 [shape = 's32[1]{0}', space=sflag, size = 0x4, scoped, tag = 'scoped memory for tpu_custom_call.1']
    #allocation4 [shape = 's32[1]{0}', space=sflag, size = 0x4, scoped, tag = 'scoped memory for tpu_custom_call.1']
    #allocation5 [shape = 'u8[49152]{0}', space=vmem, size = 0xc000, scoped, tag = 'input window, operand 1, single buffered']
    #allocation6 [shape = 's32[1]{0}', space=sflag, size = 0x4, scoped, tag = 'scoped memory for tpu_custom_call.1']
    #allocation7 [shape = 'u8[8192]{0}', space=vmem, size = 0x2000, scoped, tag = 'output window, operand 0, single buffered']
    %8 = vsyncpa [#allocation3], 0
    %9 = vsyncpa [#allocation6], 0
    %10 = vsyncpa [#allocation4], 0
    // Predicated region
    $region2: #{tpu_custom_call.1} parent=1 // pred_check
      _
    $region3: #{tpu_custom_call.1} parent=1 // pred_check_branch
      %12 = sbr.rel (0) target = $region5
    $region4: #{tpu_custom_call.1} parent=1 // pred_region
      %s14 = ssub.s32 256, 256
      %15 = vsyncadd [#allocation3], %s14
      %s16 = sshll.u32 [#allocation2], 4
      %s17 = int_to_ptr.vmem [resolvable:$true] %s16
      %22 = dma.hbm_to_vmem [thread:$0]  %s0, 256, %s17, [#allocation3], 128, 128, 8
    $region5: #{tpu_custom_call.1} parent=1 // pred_fallthru
      _
    // Predicated region
    $region6: #{tpu_custom_call.1} parent=1 // pred_check
      _
    $region7: #{tpu_custom_call.1} parent=1 // pred_check_branch
      %24 = sbr.rel (0) target = $region9
    $region8: #{tpu_custom_call.1} parent=1 // pred_region
      %s26 = ssub.s32 1536, 1536
      %27 = vsyncadd [#allocation6], %s26
      %s28 = sshll.u32 [#allocation5], 4
      %s29 = int_to_ptr.vmem [resolvable:$true] %s28
      %34 = dma.hbm_to_vmem [thread:$0]  %s1, 1536, %s29, [#allocation6], 384, 384, 24
    $region9: #{tpu_custom_call.1} parent=1 // pred_fallthru
      _
    // Predicated region
    $region10: #{tpu_custom_call.1} parent=1 // pred_check
      _
    $region11: #{tpu_custom_call.1} parent=1 // pred_check_branch
      %36 = sbr.rel (0) target = $region13
    $region12: #{tpu_custom_call.1} parent=1 // pred_region
      _
    $region13: #{tpu_custom_call.1} parent=1 // pred_fallthru
      _
    // Predicated region
    $region14: #{tpu_custom_call.1} parent=1 // pred_check
      _
    $region15: #{tpu_custom_call.1} parent=1 // pred_check_branch
      %38 = sbr.rel (0) target = $region17
    $region16: #{tpu_custom_call.1} parent=1 // pred_region
      %39 = dma.done [#allocation3], 256
    $region17: #{tpu_custom_call.1} parent=1 // pred_fallthru
      _
    // Predicated region
    $region18: #{tpu_custom_call.1} parent=1 // pred_check
      _
    $region19: #{tpu_custom_call.1} parent=1 // pred_check_branch
      %41 = sbr.rel (0) target = $region21
    $region20: #{tpu_custom_call.1} parent=1 // pred_region
      %42 = dma.done [#allocation6], 1536
    $region21: #{tpu_custom_call.1} parent=1 // pred_fallthru
      _
    %v43 = vld [vmem:[#allocation2] sm:$0xff]
    %v44 = vld [vmem:[#allocation2 + $0x8] sm:$0xff]
    %v45 = vld [vmem:[#allocation5] sm:$0xff]
    %v46 = vld [vmem:[#allocation5 + $0x8] sm:$0xff]
    %v47 = vld [vmem:[#allocation5 + $0x10] sm:$0xff]
    %v48 = vld [vmem:[#allocation5 + $0x18] sm:$0xff]
    %v49 = vld [vmem:[#allocation5 + $0x20] sm:$0xff]
    %v50 = vld [vmem:[#allocation5 + $0x28] sm:$0xff]
    %v51 = vld [vmem:[#allocation5 + $0x30] sm:$0xff]
    %v52 = vld [vmem:[#allocation5 + $0x38] sm:$0xff]
    %v53 = vld [vmem:[#allocation5 + $0x40] sm:$0xff]
    %v54 = vld [vmem:[#allocation5 + $0x48] sm:$0xff]
    %v55 = vld [vmem:[#allocation5 + $0x50] sm:$0xff]
    %v56 = vld [vmem:[#allocation5 + $0x58] sm:$0xff]
    %v57 = vld [vmem:[%s2] sm:$0x7]
    %v59 = vlaneseq
    %v60 = vshrl.u32 %v59, 7
    %v61 = vsub.s32 0, %v60
    %v62 = vrot.slane %v57, %v61
    %v63 = vlaneseq
    %v64 = vshrl.u32 %v63, 7
    %v65 = vsub.s32 1, %v64
    %v66 = vrot.slane %v57, %v65
    %v67 = vlaneseq
    %v68 = vshrl.u32 %v67, 7
    %v69 = vsub.s32 2, %v68
    %v70 = vrot.slane %v57, %v69
    %vm74 = vcmask 261120
    %v76 = vsel %vm74, %v43, 0
    %v79 = vsel %vm74, %v44, 0
    %81 = vmatprep.subr.mxu0 0.0
    %82 = vmatpush1.msra.mxu0 0.0
    %83 = vmatprep.subr.mxu0 0.0
    %84 = vmatpush1.msra.mxu0 0.0
    %85 = vmatprep.subr.mxu0 0.0
    %86 = vmatpush1.msra.mxu0 0.0
    %87 = vmatprep.subr.mxu0 0.0
    %88 = vmatpush1.msra.mxu0 0.0
    %89 = vmatprep.subr.mxu0 0.0
    %90 = vmatpush1.msra.mxu0 0.0
    %91 = vmatprep.subr.mxu0 0.0
    %92 = vmatpush1.msra.mxu0 0.0
    %93 = vmatprep.subr.mxu0 0.0
    %94 = vmatpush1.msra.mxu0 0.0
    %95 = vmatprep.subr.mxu0 0.0
    %96 = vmatpush1.msra.mxu0 0.0
    %97 = vmatprep.subr.mxu0 0.0
    %98 = vmatpush1.msra.mxu0 0.0
    %99 = vmatprep.subr.mxu0 0.0
    %100 = vmatpush1.msra.mxu0 0.0
    %101 = vmatprep.subr.mxu0 0.0
    %102 = vmatpush1.msra.mxu0 0.0
    %103 = vmatprep.subr.mxu0 0.0
    %104 = vmatpush1.msra.mxu0 0.0
    %105 = vmatprep.subr.mxu0 %v55
    %106 = vmatpush1.msra.mxu0 %v54
    %107 = vmatprep.subr.mxu0 %v52
    %108 = vmatpush1.msra.mxu0 %v51
    %109 = vmatprep.subr.mxu0 %v49
    %110 = vmatpush1.msra.mxu0 %v48
    %111 = vmatprep.subr.mxu0 %v46
    %112 = vmatpush1.msra.mxu0 %v45
    %113 = vmatprep.subr.mxu0 0.0
    %114 = vmatpush2.msra.mxu0 0.0
    %115 = vmatprep.subr.mxu0 0.0
    %116 = vmatpush2.msra.mxu0 0.0
    %117 = vmatprep.subr.mxu0 0.0
    %118 = vmatpush2.msra.mxu0 0.0
    %119 = vmatprep.subr.mxu0 0.0
    %120 = vmatpush2.msra.mxu0 0.0
    %121 = vmatprep.subr.mxu0 0.0
    %122 = vmatpush2.msra.mxu0 0.0
    %123 = vmatprep.subr.mxu0 0.0
    %124 = vmatpush2.msra.mxu0 0.0
    %125 = vmatprep.subr.mxu0 0.0
    %126 = vmatpush2.msra.mxu0 0.0
    %127 = vmatprep.subr.mxu0 0.0
    %128 = vmatpush2.msra.mxu0 0.0
    %129 = vmatprep.subr.mxu0 0.0
    %130 = vmatpush2.msra.mxu0 0.0
    %131 = vmatprep.subr.mxu0 0.0
    %132 = vmatpush2.msra.mxu0 0.0
    %133 = vmatprep.subr.mxu0 0.0
    %134 = vmatpush2.msra.mxu0 0.0
    %135 = vmatprep.subr.mxu0 0.0
    %136 = vmatpush2.msra.mxu0 0.0
    %137 = vmatprep.subr.mxu0 0.0
    %138 = vmatpush2.msra.mxu0 0.0
    %139 = vmatprep.subr.mxu0 0.0
    %140 = vmatpush2.msra.mxu0 0.0
    %141 = vmatprep.subr.mxu0 0.0
    %142 = vmatpush2.msra.mxu0 0.0
    %143 = vmatprep.subr.mxu0 0.0
    %144 = vmatpush2.msra.mxu0 0.0
    %145 = vmatprep.mubr.f32.mxu0 0.0
    %146 = vmatmul.mubr.f32.gmra.mxu0 %v76
    %v147 = vpop.f32.mrf.mxu0
    %v148 = vadd.f32 %v62, %v147
    %v149 = vpop.f32.mrf.mxu0
    %v150 = vadd.f32 %v66, %v149
    %151 = vmatprep.mubr.f32.mxu0 0.0
    %152 = vmatmul.mubr.f32.gmra.mxu0 %v79
    %v153 = vpop.f32.mrf.mxu0
    %v154 = vadd.f32 %v62, %v153
    %v155 = vpop.f32.mrf.mxu0
    %v156 = vadd.f32 %v66, %v155
    %157 = vdwg.mxu0
    %158 = vmatprep.subr.mxu0 0.0
    %159 = vmatpush1.msra.mxu0 0.0
    %160 = vmatprep.subr.mxu0 0.0
    %161 = vmatpush1.msra.mxu0 0.0
    %162 = vmatprep.subr.mxu0 0.0
    %163 = vmatpush1.msra.mxu0 0.0
    %164 = vmatprep.subr.mxu0 0.0
    %165 = vmatpush1.msra.mxu0 0.0
    %166 = vmatprep.subr.mxu0 0.0
    %167 = vmatpush1.msra.mxu0 0.0
    %168 = vmatprep.subr.mxu0 0.0
    %169 = vmatpush1.msra.mxu0 0.0
    %170 = vmatprep.subr.mxu0 0.0
    %171 = vmatpush1.msra.mxu0 0.0
    %172 = vmatprep.subr.mxu0 0.0
    %173 = vmatpush1.msra.mxu0 0.0
    %174 = vmatprep.subr.mxu0 0.0
    %175 = vmatpush1.msra.mxu0 0.0
    %176 = vmatprep.subr.mxu0 0.0
    %177 = vmatpush1.msra.mxu0 0.0
    %178 = vmatprep.subr.mxu0 0.0
    %179 = vmatpush1.msra.mxu0 0.0
    %180 = vmatprep.subr.mxu0 0.0
    %181 = vmatpush1.msra.mxu0 0.0
    %182 = vmatprep.subr.mxu0 0.0
    %183 = vmatpush1.msra.mxu0 %v56
    %184 = vmatprep.subr.mxu0 0.0
    %185 = vmatpush1.msra.mxu0 %v53
    %186 = vmatprep.subr.mxu0 0.0
    %187 = vmatpush1.msra.mxu0 %v50
    %188 = vmatprep.subr.mxu0 0.0
    %189 = vmatpush1.msra.mxu0 %v47
    %190 = vmatprep.subr.mxu0 0.0
    %191 = vmatpush2.msra.mxu0 0.0
    %192 = vmatprep.subr.mxu0 0.0
    %193 = vmatpush2.msra.mxu0 0.0
    %194 = vmatprep.subr.mxu0 0.0
    %195 = vmatpush2.msra.mxu0 0.0
    %196 = vmatprep.subr.mxu0 0.0
    %197 = vmatpush2.msra.mxu0 0.0
    %198 = vmatprep.subr.mxu0 0.0
    %199 = vmatpush2.msra.mxu0 0.0
    %200 = vmatprep.subr.mxu0 0.0
    %201 = vmatpush2.msra.mxu0 0.0
    %202 = vmatprep.subr.mxu0 0.0
    %203 = vmatpush2.msra.mxu0 0.0
    %204 = vmatprep.subr.mxu0 0.0
    %205 = vmatpush2.msra.mxu0 0.0
    %206 = vmatprep.subr.mxu0 0.0
    %207 = vmatpush2.msra.mxu0 0.0
    %208 = vmatprep.subr.mxu0 0.0
    %209 = vmatpush2.msra.mxu0 0.0
    %210 = vmatprep.subr.mxu0 0.0
    %211 = vmatpush2.msra.mxu0 0.0
    %212 = vmatprep.subr.mxu0 0.0
    %213 = vmatpush2.msra.mxu0 0.0
    %214 = vmatprep.subr.mxu0 0.0
    %215 = vmatpush2.msra.mxu0 0.0
    %216 = vmatprep.subr.mxu0 0.0
    %217 = vmatpush2.msra.mxu0 0.0
    %218 = vmatprep.subr.mxu0 0.0
    %219 = vmatpush2.msra.mxu0 0.0
    %220 = vmatprep.subr.mxu0 0.0
    %221 = vmatpush2.msra.mxu0 0.0
    %222 = vmatprep.mubr.f32.mxu0 0.0
    %223 = vmatmul.mubr.f32.gmra.mxu0 %v76
    %v224 = vpop.f32.mrf.mxu0
    %v225 = vadd.f32 %v70, %v224
    %v226 = vpop.f32.mrf.mxu0
    %227 = vmatprep.mubr.f32.mxu0 0.0
    %228 = vmatmul.mubr.f32.gmra.mxu0 %v79
    %v229 = vpop.f32.mrf.mxu0
    %v230 = vadd.f32 %v70, %v229
    %v231 = vpop.f32.mrf.mxu0
    %232 = vdwg.mxu0
    %233 = vmatprep.subr.mxu0 0.0
    %234 = vmatpush1.xpose.msra.mxu0 0.0
    %235 = vmatprep.subr.mxu0 0.0
    %236 = vmatpush1.xpose.msra.mxu0 0.0
    %237 = vmatprep.subr.mxu0 0.0
    %238 = vmatpush1.xpose.msra.mxu0 0.0
    %239 = vmatprep.subr.mxu0 0.0
    %240 = vmatpush1.xpose.msra.mxu0 0.0
    %241 = vmatprep.subr.mxu0 0.0
    %242 = vmatpush1.xpose.msra.mxu0 0.0
    %243 = vmatprep.subr.mxu0 0.0
    %244 = vmatpush1.xpose.msra.mxu0 0.0
    %245 = vmatprep.subr.mxu0 0.0
    %246 = vmatpush1.xpose.msra.mxu0 0.0
    %247 = vmatprep.subr.mxu0 0.0
    %248 = vmatpush1.xpose.msra.mxu0 0.0
    %249 = vmatprep.subr.mxu0 0.0
    %250 = vmatpush1.xpose.msra.mxu0 0.0
    %251 = vmatprep.subr.mxu0 0.0
    %252 = vmatpush1.xpose.msra.mxu0 0.0
    %253 = vmatprep.subr.mxu0 0.0
    %254 = vmatpush1.xpose.msra.mxu0 0.0
    %255 = vmatprep.subr.mxu0 0.0
    %256 = vmatpush1.xpose.msra.mxu0 0.0
    %257 = vmatprep.subr.mxu0 0.0
    %258 = vmatpush1.xpose.msra.mxu0 0.0
    %259 = vmatprep.subr.mxu0 0.0
    %260 = vmatpush1.xpose.msra.mxu0 0.0
    %261 = vmatprep.subr.mxu0 0.0
    %262 = vmatpush1.xpose.msra.mxu0 0.0
    %263 = vmatprep.subr.mxu0 0.0
    %264 = vmatpush1.xpose.msra.mxu0 %v150
    %265 = vmatprep.subr.mxu0 0.0
    %266 = vmatpush2.xpose.msra.mxu0 0.0
    %267 = vmatprep.subr.mxu0 0.0
    %268 = vmatpush2.xpose.msra.mxu0 0.0
    %269 = vmatprep.subr.mxu0 0.0
    %270 = vmatpush2.xpose.msra.mxu0 0.0
    %271 = vmatprep.subr.mxu0 0.0
    %272 = vmatpush2.xpose.msra.mxu0 0.0
    %273 = vmatprep.subr.mxu0 0.0
    %274 = vmatpush2.xpose.msra.mxu0 0.0
    %275 = vmatprep.subr.mxu0 0.0
    %276 = vmatpush2.xpose.msra.mxu0 0.0
    %277 = vmatprep.subr.mxu0 0.0
    %278 = vmatpush2.xpose.msra.mxu0 0.0
    %279 = vmatprep.subr.mxu0 0.0
    %280 = vmatpush2.xpose.msra.mxu0 0.0
    %281 = vmatprep.subr.mxu0 0.0
    %282 = vmatpush2.xpose.msra.mxu0 0.0
    %283 = vmatprep.subr.mxu0 0.0
    %284 = vmatpush2.xpose.msra.mxu0 0.0
    %285 = vmatprep.subr.mxu0 0.0
    %286 = vmatpush2.xpose.msra.mxu0 0.0
    %287 = vmatprep.subr.mxu0 0.0
    %288 = vmatpush2.xpose.msra.mxu0 0.0
    %289 = vmatprep.subr.mxu0 0.0
    %290 = vmatpush2.xpose.msra.mxu0 0.0
    %291 = vmatprep.subr.mxu0 0.0
    %292 = vmatpush2.xpose.msra.mxu0 0.0
    %293 = vmatprep.subr.mxu0 0.0
    %294 = vmatpush2.xpose.msra.mxu0 0.0
    %295 = vmatprep.subr.mxu0 0.0
    %296 = vmatpush2.xpose.msra.mxu0 0.0
    %297 = vmatprep.mubr.f32.mxu0 0.0
    %298 = vmatmul.mubr.f32.gmra.mxu0 %v148
    %v299 = vpop.f32.mrf.mxu0
    %v300 = vadd.f32 0.0, %v299
    %v301 = vpop.f32.mrf.mxu0
    %302 = vdwg.mxu0
    %303 = vmatprep.subr.mxu0 0.0
    %304 = vmatpush1.xpose.msra.mxu0 0.0
    %305 = vmatprep.subr.mxu0 0.0
    %306 = vmatpush1.xpose.msra.mxu0 0.0
    %307 = vmatprep.subr.mxu0 0.0
    %308 = vmatpush1.xpose.msra.mxu0 0.0
    %309 = vmatprep.subr.mxu0 0.0
    %310 = vmatpush1.xpose.msra.mxu0 0.0
    %311 = vmatprep.subr.mxu0 0.0
    %312 = vmatpush1.xpose.msra.mxu0 0.0
    %313 = vmatprep.subr.mxu0 0.0
    %314 = vmatpush1.xpose.msra.mxu0 0.0
    %315 = vmatprep.subr.mxu0 0.0
    %316 = vmatpush1.xpose.msra.mxu0 0.0
    %317 = vmatprep.subr.mxu0 0.0
    %318 = vmatpush1.xpose.msra.mxu0 0.0
    %319 = vmatprep.subr.mxu0 0.0
    %320 = vmatpush1.xpose.msra.mxu0 0.0
    %321 = vmatprep.subr.mxu0 0.0
    %322 = vmatpush1.xpose.msra.mxu0 0.0
    %323 = vmatprep.subr.mxu0 0.0
    %324 = vmatpush1.xpose.msra.mxu0 0.0
    %325 = vmatprep.subr.mxu0 0.0
    %326 = vmatpush1.xpose.msra.mxu0 0.0
    %327 = vmatprep.subr.mxu0 0.0
    %328 = vmatpush1.xpose.msra.mxu0 0.0
    %329 = vmatprep.subr.mxu0 0.0
    %330 = vmatpush1.xpose.msra.mxu0 0.0
    %331 = vmatprep.subr.mxu0 0.0
    %332 = vmatpush1.xpose.msra.mxu0 0.0
    %333 = vmatprep.subr.mxu0 0.0
    %334 = vmatpush1.xpose.msra.mxu0 %v156
    %335 = vmatprep.subr.mxu0 0.0
    %336 = vmatpush2.xpose.msra.mxu0 0.0
    %337 = vmatprep.subr.mxu0 0.0
    %338 = vmatpush2.xpose.msra.mxu0 0.0
    %339 = vmatprep.subr.mxu0 0.0
    %340 = vmatpush2.xpose.msra.mxu0 0.0
    %341 = vmatprep.subr.mxu0 0.0
    %342 = vmatpush2.xpose.msra.mxu0 0.0
    %343 = vmatprep.subr.mxu0 0.0
    %344 = vmatpush2.xpose.msra.mxu0 0.0
    %345 = vmatprep.subr.mxu0 0.0
    %346 = vmatpush2.xpose.msra.mxu0 0.0
    %347 = vmatprep.subr.mxu0 0.0
    %348 = vmatpush2.xpose.msra.mxu0 0.0
    %349 = vmatprep.subr.mxu0 0.0
    %350 = vmatpush2.xpose.msra.mxu0 0.0
    %351 = vmatprep.subr.mxu0 0.0
    %352 = vmatpush2.xpose.msra.mxu0 0.0
    %353 = vmatprep.subr.mxu0 0.0
    %354 = vmatpush2.xpose.msra.mxu0 0.0
    %355 = vmatprep.subr.mxu0 0.0
    %356 = vmatpush2.xpose.msra.mxu0 0.0
    %357 = vmatprep.subr.mxu0 0.0
    %358 = vmatpush2.xpose.msra.mxu0 0.0
    %359 = vmatprep.subr.mxu0 0.0
    %360 = vmatpush2.xpose.msra.mxu0 0.0
    %361 = vmatprep.subr.mxu0 0.0
    %362 = vmatpush2.xpose.msra.mxu0 0.0
    %363 = vmatprep.subr.mxu0 0.0
    %364 = vmatpush2.xpose.msra.mxu0 0.0
    %365 = vmatprep.subr.mxu0 0.0
    %366 = vmatpush2.xpose.msra.mxu0 0.0
    %367 = vmatprep.mubr.f32.mxu0 0.0
    %368 = vmatmul.mubr.f32.gmra.mxu0 %v154
    %v369 = vpop.f32.mrf.mxu0
    %v370 = vadd.f32 0.0, %v369
    %v371 = vpop.f32.mrf.mxu0
    %372 = vdwg.mxu0
    %vm373 = vcmask 64512
    %v374 = vsel %vm373, %v300, -inf
    %375 = vmax.xlane.f32.xlu0 %v374
    %v376 = vpop.xlane.xlu0 %375
    %v377 = vsel %vm373, %v370, -inf
    %378 = vmax.xlane.f32.xlu0 %v377
    %v379 = vpop.xlane.xlu0 %378
    %v380 = vsub.f32 %v300, %v376
    %v381 = vsub.f32 %v370, %v379
    %v382 = vmul.f32 %v380, 1.442695
    %v383 = vpow.pop %v382
    %v384 = vmul.f32 %v381, 1.442695
    %v385 = vpow.pop %v384
    %v387 = vsel %vm373, %v383, 0
    %389 = vmatprep.subr.mxu0 0.0
    %390 = vmatpush1.msra.mxu0 0.0
    %391 = vmatprep.subr.mxu0 0.0
    %392 = vmatpush1.msra.mxu0 0.0
    %393 = vmatprep.subr.mxu0 0.0
    %394 = vmatpush1.msra.mxu0 0.0
    %395 = vmatprep.subr.mxu0 0.0
    %396 = vmatpush1.msra.mxu0 0.0
    %397 = vmatprep.subr.mxu0 0.0
    %398 = vmatpush1.msra.mxu0 0.0
    %399 = vmatprep.subr.mxu0 0.0
    %400 = vmatpush1.msra.mxu0 0.0
    %401 = vmatprep.subr.mxu0 0.0
    %402 = vmatpush1.msra.mxu0 0.0
    %403 = vmatprep.subr.mxu0 0.0
    %404 = vmatpush1.msra.mxu0 0.0
    %405 = vmatprep.subr.mxu0 0.0
    %406 = vmatpush1.msra.mxu0 0.0
    %407 = vmatprep.subr.mxu0 0.0
    %408 = vmatpush1.msra.mxu0 0.0
    %409 = vmatprep.subr.mxu0 0.0
    %410 = vmatpush1.msra.mxu0 0.0
    %411 = vmatprep.subr.mxu0 0.0
    %412 = vmatpush1.msra.mxu0 0.0
    %413 = vmatprep.subr.mxu0 0.0
    %414 = vmatpush1.msra.mxu0 0.0
    %415 = vmatprep.subr.mxu0 0.0
    %416 = vmatpush1.msra.mxu0 0.0
    %417 = vmatprep.subr.mxu0 0.0
    %418 = vmatpush1.msra.mxu0 0.0
    %419 = vmatprep.subr.mxu0 0.0
    %420 = vmatpush1.msra.mxu0 %v225
    %421 = vmatprep.subr.mxu0 0.0
    %422 = vmatpush2.msra.mxu0 0.0
    %423 = vmatprep.subr.mxu0 0.0
    %424 = vmatpush2.msra.mxu0 0.0
    %425 = vmatprep.subr.mxu0 0.0
    %426 = vmatpush2.msra.mxu0 0.0
    %427 = vmatprep.subr.mxu0 0.0
    %428 = vmatpush2.msra.mxu0 0.0
    %429 = vmatprep.subr.mxu0 0.0
    %430 = vmatpush2.msra.mxu0 0.0
    %431 = vmatprep.subr.mxu0 0.0
    %432 = vmatpush2.msra.mxu0 0.0
    %433 = vmatprep.subr.mxu0 0.0
    %434 = vmatpush2.msra.mxu0 0.0
    %435 = vmatprep.subr.mxu0 0.0
    %436 = vmatpush2.msra.mxu0 0.0
    %437 = vmatprep.subr.mxu0 0.0
    %438 = vmatpush2.msra.mxu0 0.0
    %439 = vmatprep.subr.mxu0 0.0
    %440 = vmatpush2.msra.mxu0 0.0
    %441 = vmatprep.subr.mxu0 0.0
    %442 = vmatpush2.msra.mxu0 0.0
    %443 = vmatprep.subr.mxu0 0.0
    %444 = vmatpush2.msra.mxu0 0.0
    %445 = vmatprep.subr.mxu0 0.0
    %446 = vmatpush2.msra.mxu0 0.0
    %447 = vmatprep.subr.mxu0 0.0
    %448 = vmatpush2.msra.mxu0 0.0
    %449 = vmatprep.subr.mxu0 0.0
    %450 = vmatpush2.msra.mxu0 0.0
    %451 = vmatprep.subr.mxu0 0.0
    %452 = vmatpush2.msra.mxu0 0.0
    %453 = vmatprep.mubr.f32.mxu0 0.0
    %454 = vmatmul.mubr.f32.gmra.mxu0 %v387
    %v455 = vpop.f32.mrf.mxu0
    %v456 = vadd.f32 0.0, %v455
    %v457 = vpop.f32.mrf.mxu0
    %458 = vdwg.mxu0
    %v460 = vsel %vm373, %v385, 0
    %462 = vmatprep.subr.mxu0 0.0
    %463 = vmatpush1.msra.mxu0 0.0
    %464 = vmatprep.subr.mxu0 0.0
    %465 = vmatpush1.msra.mxu0 0.0
    %466 = vmatprep.subr.mxu0 0.0
    %467 = vmatpush1.msra.mxu0 0.0
    %468 = vmatprep.subr.mxu0 0.0
    %469 = vmatpush1.msra.mxu0 0.0
    %470 = vmatprep.subr.mxu0 0.0
    %471 = vmatpush1.msra.mxu0 0.0
    %472 = vmatprep.subr.mxu0 0.0
    %473 = vmatpush1.msra.mxu0 0.0
    %474 = vmatprep.subr.mxu0 0.0
    %475 = vmatpush1.msra.mxu0 0.0
    %476 = vmatprep.subr.mxu0 0.0
    %477 = vmatpush1.msra.mxu0 0.0
    %478 = vmatprep.subr.mxu0 0.0
    %479 = vmatpush1.msra.mxu0 0.0
    %480 = vmatprep.subr.mxu0 0.0
    %481 = vmatpush1.msra.mxu0 0.0
    %482 = vmatprep.subr.mxu0 0.0
    %483 = vmatpush1.msra.mxu0 0.0
    %484 = vmatprep.subr.mxu0 0.0
    %485 = vmatpush1.msra.mxu0 0.0
    %486 = vmatprep.subr.mxu0 0.0
    %487 = vmatpush1.msra.mxu0 0.0
    %488 = vmatprep.subr.mxu0 0.0
    %489 = vmatpush1.msra.mxu0 0.0
    %490 = vmatprep.subr.mxu0 0.0
    %491 = vmatpush1.msra.mxu0 0.0
    %492 = vmatprep.subr.mxu0 0.0
    %493 = vmatpush1.msra.mxu0 %v230
    %494 = vmatprep.subr.mxu0 0.0
    %495 = vmatpush2.msra.mxu0 0.0
    %496 = vmatprep.subr.mxu0 0.0
    %497 = vmatpush2.msra.mxu0 0.0
    %498 = vmatprep.subr.mxu0 0.0
    %499 = vmatpush2.msra.mxu0 0.0
    %500 = vmatprep.subr.mxu0 0.0
    %501 = vmatpush2.msra.mxu0 0.0
    %502 = vmatprep.subr.mxu0 0.0
    %503 = vmatpush2.msra.mxu0 0.0
    %504 = vmatprep.subr.mxu0 0.0
    %505 = vmatpush2.msra.mxu0 0.0
    %506 = vmatprep.subr.mxu0 0.0
    %507 = vmatpush2.msra.mxu0 0.0
    %508 = vmatprep.subr.mxu0 0.0
    %509 = vmatpush2.msra.mxu0 0.0
    %510 = vmatprep.subr.mxu0 0.0
    %511 = vmatpush2.msra.mxu0 0.0
    %512 = vmatprep.subr.mxu0 0.0
    %513 = vmatpush2.msra.mxu0 0.0
    %514 = vmatprep.subr.mxu0 0.0
    %515 = vmatpush2.msra.mxu0 0.0
    %516 = vmatprep.subr.mxu0 0.0
    %517 = vmatpush2.msra.mxu0 0.0
    %518 = vmatprep.subr.mxu0 0.0
    %519 = vmatpush2.msra.mxu0 0.0
    %520 = vmatprep.subr.mxu0 0.0
    %521 = vmatpush2.msra.mxu0 0.0
    %522 = vmatprep.subr.mxu0 0.0
    %523 = vmatpush2.msra.mxu0 0.0
    %524 = vmatprep.subr.mxu0 0.0
    %525 = vmatpush2.msra.mxu0 0.0
    %526 = vmatprep.mubr.f32.mxu0 0.0
    %527 = vmatmul.mubr.f32.gmra.mxu0 %v460
    %v528 = vpop.f32.mrf.mxu0
    %v529 = vadd.f32 0.0, %v528
    %v530 = vpop.f32.mrf.mxu0
    %531 = vdwg.mxu0
    %v532 = vrcp.pop %v456
    %v533 = vrcp.pop %v529
    %v534 = vmul.f32 %v532, 0.25
    %v535 = vmul.f32 %v533, 0.25
    %537 = vset.pattern.permute.xlu0 32
    %538 = vperm.xlu0 %537, %v534
    %v539 = vpop.permute.xlu0 %538
    %542 = vset.pattern.permute.xlu0 32
    %543 = vperm.xlu0 %542, %v535
    %v544 = vpop.permute.xlu0 %543
    %v546 = vmul.f32 %v456, %v539
    %v547 = vmul.f32 %v529, %v544
    %548 = vst.msk [vmem:[#allocation7] sm:$0xff] %vm74, %v546
    %549 = vst.msk [vmem:[#allocation7 + $0x8] sm:$0xff] %vm74, %v547
    // Predicated region
    $region22: #{tpu_custom_call.1} parent=1 // pred_check
      _
    $region23: #{tpu_custom_call.1} parent=1 // pred_check_branch
      %551 = sbr.rel (0) target = $region25
    $region24: #{tpu_custom_call.1} parent=1 // pred_region
      %s553 = ssub.s32 256, 256
      %554 = vsyncadd [#allocation4], %s553
      %s555 = sshll.u32 [#allocation7], 4
      %s556 = int_to_ptr.vmem [resolvable:$true] %s555
      %561 = dma.vmem_to_hbm [thread:$0]  %s556, 256, %s3, [#allocation4], 128, 128, 8
    $region25: #{tpu_custom_call.1} parent=1 // pred_fallthru
      _
    // Predicated region
    $region26: #{tpu_custom_call.1} parent=1 // pred_check
      _
    $region27: #{tpu_custom_call.1} parent=1 // pred_check_branch
      %563 = sbr.rel (0) target = $region29
    $region28: #{tpu_custom_call.1} parent=1 // pred_region
      %564 = dma.done [#allocation4], 256
    $region29: #{tpu_custom_call.1} parent=1 // pred_fallthru
      _
    %565 = vsyncpa [#allocation3], 1
    %566 = vsyncpa [#allocation6], 1
    %567 = vsyncpa [#allocation4], 1

</llo_original>
